<compile_context>
chip_gen: v6e
topology: v6e:2x2x1
jax: 0.10.0
libtpu: 0.0.40
codegen_flags: <defaults>
</compile_context>

<pallas_src>
import math
import functools

import jax
import jax.numpy as jnp
from jax.experimental import pallas as pl
from jax.experimental.pallas import tpu as pltpu


# ---------------------------------------------------------------------------
# Tiled linear projection kernel:  y = x @ W^T + b
# (weights stored pre-transposed as [in, out] -> no per-call hidden^2 transpose)
# ---------------------------------------------------------------------------
def linear_kernel(x_ref, wt_ref, b_ref, o_ref):
    o_ref[...] = (
        jnp.dot(x_ref[...], wt_ref[...], preferred_element_type=jnp.float32)
        + b_ref[...]
    )


def pallas_linear(x2d, wt, b, *, block_m=256):
    """x2d: [M, K]; wt: [K, N] (pre-transposed nn.Linear weight); b: [N]."""
    M, K = x2d.shape
    N = wt.shape[1]
    tm = M if M <= block_m else block_m
    return pl.pallas_call(
        linear_kernel,
        out_shape=jax.ShapeDtypeStruct((M, N), jnp.float32),
        grid=(pl.cdiv(M, tm),),
        in_specs=[
            pl.BlockSpec((tm, K), lambda i: (i, 0)),
            pl.BlockSpec((K, N), lambda i: (0, 0)),
            pl.BlockSpec((1, N), lambda i: (0, 0)),
        ],
        out_specs=pl.BlockSpec((tm, N), lambda i: (i, 0)),
        compiler_params=pltpu.CompilerParams(dimension_semantics=("parallel",)),
    )(x2d, wt, b.reshape(1, N))


# ---------------------------------------------------------------------------
# Attention kernel: one (batch, query-block) tile, all heads, key-block loop
# with online-softmax accumulation in VMEM scratch.
# ---------------------------------------------------------------------------
def attn_kernel(q_ref, k_ref, v_ref, pos_ref, wr_ref, br_ref, u_ref, vv_ref,
                mask_ref, o_ref, m_scr, l_scr, acc_scr,
                *, scaled, num_heads, per_head):
    d = per_head
    kv_idx = pl.program_id(2)

    @pl.when(kv_idx == 0)
    def _init():
        m_scr[...] = jnp.full_like(m_scr, -jnp.inf)
        l_scr[...] = jnp.zeros_like(l_scr)
        acc_scr[...] = jnp.zeros_like(acc_scr)

    pos = pos_ref[...]                    # (t_q, t_k, hidden)
    mask = mask_ref[...]                  # (1, t_k)
    neg_big = jnp.float32(-1e15)
    inv_scale = jnp.float32(1.0 / math.sqrt(d))

    for hh in range(num_heads):
        q = q_ref[hh]                     # (t_q, d)
        k = k_ref[hh]                     # (t_k, d)
        val = v_ref[hh]                   # (t_k, d)
        qu = q + u_ref[hh]                # (t_q, d)  query + u (content term)
        qv = q + vv_ref[hh]               # (t_q, d)  query + v (position term)

        # Content term A_C = (q + u) @ k^T                          (MXU)
        a_c = jnp.einsum("id,jd->ij", qu, k,
                         preferred_element_type=jnp.float32)        # (t_q, t_k)

        # W_r folded onto the query side: qr = (q + v) @ W_r_head   (MXU)
        qr = jnp.dot(qv, wr_ref[hh],
                     preferred_element_type=jnp.float32)            # (t_q, hidden)
        # B_D[i, j] = qr[i, :] . pos[i, j, :]    (batched MXU contraction)
        b_d = jnp.einsum("izm,ikm->izk", qr[:, None, :], pos,
                         preferred_element_type=jnp.float32)[:, 0, :]  # (t_q, t_k)
        # b_r contribution (constant along keys)
        b_bias = jnp.sum(qv * br_ref[hh], axis=-1, keepdims=True)   # (t_q, 1)

        scores = a_c + b_d + b_bias
        if scaled:
            scores = scores * inv_scale
        scores = jnp.where(mask > 0.5, scores, neg_big)

        # Online softmax accumulation over key blocks.
        m_old = m_scr[hh]                                           # (t_q, 1)
        m_new = jnp.maximum(m_old, jnp.max(scores, axis=-1, keepdims=True))
        alpha = jnp.exp(m_old - m_new)
        p = jnp.exp(scores - m_new)                                 # (t_q, t_k)
        l_scr[hh] = alpha * l_scr[hh] + jnp.sum(p, axis=-1, keepdims=True)
        acc_scr[hh] = alpha * acc_scr[hh] + jnp.dot(
            p, val, preferred_element_type=jnp.float32)             # (t_q, d)
        m_scr[hh] = m_new

    @pl.when(kv_idx == pl.num_programs(2) - 1)
    def _finalize():
        # TODO(synk): nn.Dropout(attn_dropout) on the attention weights is identity
        # here (eval mode / p = 0), so it is omitted.
        for hh in range(num_heads):
            # Normalize after the attn @ V matmul; lane-dense (t_q, hidden) write.
            o_ref[:, hh * d:(hh + 1) * d] = acc_scr[hh] * pl.reciprocal(
                l_scr[hh], approx=False)


def mha_attention_core(q4, k4, v4, pos, wr_hdm, br_h1d, u_h1d, v_h1d, mask_f,
                       *, scaled, block_q=None, block_k=None):
    """q4,k4,v4: [b,h,s,d]; pos: [b,s,s,hidden]; wr_hdm: [h,d,hidden];
    br/u/v: [h,1,d]; mask_f: [b,1,s].  Returns [b, s, hidden]."""
    b, h, s, d = q4.shape
    hidden = h * d

    if block_q is None:
        block_q = min(s, 256)
    if s % block_q != 0:
        block_q = s
    if block_k is None:
        block_k = min(s, 512)
    if s % block_k != 0:
        block_k = s
    n_q = s // block_q
    n_kv = s // block_k

    kernel = functools.partial(attn_kernel, scaled=scaled, num_heads=h,
                               per_head=d)
    return pl.pallas_call(
        kernel,
        out_shape=jax.ShapeDtypeStruct((b, s, hidden), jnp.float32),
        grid=(b, n_q, n_kv),
        in_specs=[
            pl.BlockSpec((None, h, block_q, d), lambda bi, qi, ki: (bi, 0, qi, 0)),
            pl.BlockSpec((None, h, block_k, d), lambda bi, qi, ki: (bi, 0, ki, 0)),
            pl.BlockSpec((None, h, block_k, d), lambda bi, qi, ki: (bi, 0, ki, 0)),
            pl.BlockSpec((None, block_q, block_k, hidden),
                         lambda bi, qi, ki: (bi, qi, ki, 0)),
            pl.BlockSpec((h, d, hidden), lambda bi, qi, ki: (0, 0, 0)),
            pl.BlockSpec((h, 1, d), lambda bi, qi, ki: (0, 0, 0)),
            pl.BlockSpec((h, 1, d), lambda bi, qi, ki: (0, 0, 0)),
            pl.BlockSpec((h, 1, d), lambda bi, qi, ki: (0, 0, 0)),
            pl.BlockSpec((None, 1, block_k), lambda bi, qi, ki: (bi, 0, ki)),
        ],
        out_specs=pl.BlockSpec((None, block_q, hidden),
                               lambda bi, qi, ki: (bi, qi, 0)),
        scratch_shapes=[
            pltpu.VMEM((h, block_q, 1), jnp.float32),   # running max
            pltpu.VMEM((h, block_q, 1), jnp.float32),   # running denominator
            pltpu.VMEM((h, block_q, d), jnp.float32),   # running numerator
        ],
        compiler_params=pltpu.CompilerParams(
            dimension_semantics=("parallel", "parallel", "arbitrary")),
    )(q4, k4, v4, pos, wr_hdm, br_h1d, u_h1d, v_h1d, mask_f)


# ---------------------------------------------------------------------------
# Module: parameters + forward
# ---------------------------------------------------------------------------
def init_params(key, hidden_size, num_heads):
    per_head = hidden_size // num_heads
    keys = jax.random.split(key, 10)
    bound = 1.0 / math.sqrt(hidden_size)

    def lin_t(kw, kb):
        # stored as W^T, i.e. [in, out] -> no per-call transpose needed.
        wt = jax.random.uniform(kw, (hidden_size, hidden_size), jnp.float32,
                                -bound, bound)
        bb = jax.random.uniform(kb, (hidden_size,), jnp.float32, -bound, bound)
        return wt, bb

    wr_t, br = lin_t(keys[6], keys[7])
    # Head-sliced W_r for the query-side fold: wr_hdm[h, dd, m] == W_r[h*d+dd, m]
    wr_hdm = wr_t.reshape(hidden_size, num_heads, per_head).transpose(1, 2, 0)
    br_hd = br.reshape(num_heads, per_head)

    return {
        "w_k": lin_t(keys[0], keys[1]),
        "w_q": lin_t(keys[2], keys[3]),
        "w_v": lin_t(keys[4], keys[5]),
        "w_r": (wr_hdm, br_hd),
        "u": jax.random.normal(keys[8], (num_heads, per_head), jnp.float32),
        "v": jax.random.normal(keys[9], (num_heads, per_head), jnp.float32),
    }


def multi_head_attention(params, key_in, query_in, value_in, pos, flat_mask,
                         num_heads, scaled=True, block_q=None, block_k=None):
    b, s, hidden = key_in.shape
    d = hidden // num_heads

    wk_t, bk = params["w_k"]
    wq_t, bq = params["w_q"]
    wv_t, bv = params["w_v"]
    wr_hdm, br_hd = params["w_r"]

    # Projections (tiled Pallas matmul kernels). NOTE: the w_r projection of `pos`
    # is intentionally NOT done here -- it is folded onto the query side inside
    # the attention kernel (removes the [b,h,s,s,d] rel tensor entirely).
    k_proj = pallas_linear(key_in.reshape(b * s, hidden), wk_t, bk)
    q_proj = pallas_linear(query_in.reshape(b * s, hidden), wq_t, bq)
    v_proj = pallas_linear(value_in.reshape(b * s, hidden), wv_t, bv)

    # Split heads (small [b,s,hidden] transposes only; pos is fed untransposed).
    k4 = k_proj.reshape(b, s, num_heads, d).transpose(0, 2, 1, 3)   # [b,h,s,d]
    q4 = q_proj.reshape(b, s, num_heads, d).transpose(0, 2, 1, 3)
    v4 = v_proj.reshape(b, s, num_heads, d).transpose(0, 2, 1, 3)

    u_h1d = params["u"].reshape(num_heads, 1, d)
    v_h1d = params["v"].reshape(num_heads, 1, d)
    br_h1d = br_hd.reshape(num_heads, 1, d)
    mask_f = flat_mask.astype(jnp.float32).reshape(b, 1, s)

    return mha_attention_core(q4, k4, v4, pos, wr_hdm, br_h1d, u_h1d, v_h1d,
                              mask_f, scaled=scaled,
                              block_q=block_q, block_k=block_k)


# ---------------------------------------------------------------------------
# Pure-JAX reference (matches the PyTorch forward)
# ---------------------------------------------------------------------------
def reference(params, key_in, query_in, value_in, pos, flat_mask, num_heads,
              scaled=True):
    b, s, hidden = key_in.shape
    d = hidden // num_heads

    def lin(x, wb):
        wt, bb = wb
        return x @ wt + bb

    k = lin(key_in, params["w_k"]).reshape(b, s, num_heads, d).transpose(0, 2, 1, 3)
    q = lin(query_in, params["w_q"]).reshape(b, s, num_heads, d).transpose(0, 2, 1, 3)
    v = lin(value_in, params["w_v"]).reshape(b, s, num_heads, d).transpose(0, 2, 1, 3)

    wr_hdm, br_hd = params["w_r"]
    rel = jnp.einsum("bijm,hdm->bijhd", pos, wr_hdm) + br_hd        # [b,s,s,h,d]

    u = params["u"]
    vp = params["v"]
    a_c = jnp.einsum("bhid,bhjd->bhij", q + u[None, :, None, :], k)
    b_d = jnp.einsum("bhid,bijhd->bhij", q + vp[None, :, None, :], rel)
    scores = a_c + b_d
    if scaled:
        scores = scores / math.sqrt(d)
    valid = flat_mask[:, None, None, :] > 0
    scores = jnp.where(valid, scores, -1e15)
    attn = jax.nn.softmax(scores, axis=-1)
    out = jnp.einsum("bhij,bhjd->bhid", attn, v)
    return out.transpose(0, 2, 1, 3).reshape(b, s, hidden)


# ---------------------------------------------------------------------------
if __name__ == "__main__":
    # Keep both the in-kernel MXU dots and the XLA reference at full f32 accuracy
    # so the numerical comparison below is tight.
    jax.config.update("jax_default_matmul_precision", "highest")

    B, S, HIDDEN, NUM_HEADS = 2, 8, 32, 4

    root = jax.random.PRNGKey(0)
    kp, kk, kq, kv, kpos = jax.random.split(root, 5)

    params = init_params(kp, HIDDEN, NUM_HEADS)
    key_in = jax.random.normal(kk, (B, S, HIDDEN), jnp.float32)
    query_in = jax.random.normal(kq, (B, S, HIDDEN), jnp.float32)
    value_in = jax.random.normal(kv, (B, S, HIDDEN), jnp.float32)
    pos = jax.random.normal(kpos, (B, S, S, HIDDEN), jnp.float32)
    flat_mask = jnp.array([[1] * 8, [1] * 5 + [0] * 3], dtype=jnp.int32)

    out = multi_head_attention(params, key_in, query_in, value_in, pos,
                               flat_mask, NUM_HEADS, scaled=True)
    out = jax.block_until_ready(out)

    ref = reference(params, key_in, query_in, value_in, pos, flat_mask,
                    NUM_HEADS, scaled=True)
    assert out.shape == (B, S, HIDDEN)
    assert jnp.allclose(out, ref, atol=1e-4, rtol=1e-4), "mismatch vs reference"

    print("KERNEL_OK")
</pallas_src>

<mosaic_0001>
module attributes {stable_mosaic.version = 11 : i64} {
  func.func @linear_kernel(%arg0: i32, %arg1: memref<16x32xf32, #tpu.memory_space<vmem>>, %arg2: memref<32x32xf32, #tpu.memory_space<vmem>>, %arg3: memref<1x32xf32, #tpu.memory_space<vmem>>, %arg4: memref<16x32xf32, #tpu.memory_space<vmem>>) attributes {dimension_semantics = [#tpu.dimension_semantics<parallel>], iteration_bounds = array<i64: 1>, scalar_prefetch = 0 : i64, scratch_operands = 0 : i64, tpu.core_type = #tpu.core_type<tc>, window_params = [{transform_indices = @transform_0, window_bounds = array<i64: 16, 32>}, {pipeline_mode = #tpu.pipeline_mode<synchronous>, transform_indices = @transform_1, window_bounds = array<i64: 32, 32>}, {pipeline_mode = #tpu.pipeline_mode<synchronous>, transform_indices = @transform_2, window_bounds = array<i64: 1, 32>}, {transform_indices = @transform_3, window_bounds = array<i64: 16, 32>}]} {
    %c0 = arith.constant 0 : index
    %c0_0 = arith.constant 0 : index
    %0 = vector.load %arg1[%c0, %c0_0] : memref<16x32xf32, #tpu.memory_space<vmem>>, vector<16x32xf32>
    %c0_1 = arith.constant 0 : index
    %c0_2 = arith.constant 0 : index
    %1 = vector.load %arg2[%c0_1, %c0_2] : memref<32x32xf32, #tpu.memory_space<vmem>>, vector<32x32xf32>
    %cst = arith.constant dense<0.000000e+00> : vector<16x32xf32>
    %2 = tpu.matmul %0, %1, %cst {dimension_numbers = #tpu.dot_dimension_numbers<[1], [0], [0], [1], [0, 0, 1, 1], [], []>, precision = #tpu.contract_precision<fp32>} : vector<16x32xf32>, vector<32x32xf32>, vector<16x32xf32> -> vector<16x32xf32>
    %c0_3 = arith.constant 0 : index
    %c0_4 = arith.constant 0 : index
    %3 = vector.load %arg3[%c0_3, %c0_4] : memref<1x32xf32, #tpu.memory_space<vmem>>, vector<1x32xf32>
    %4 = vector.broadcast %3 : vector<1x32xf32> to vector<16x32xf32>
    %5 = arith.addf %2, %4 : vector<16x32xf32>
    %c0_5 = arith.constant 0 : index
    %c0_6 = arith.constant 0 : index
    %6 = vector.load %arg4[%c0_5, %c0_6] : memref<16x32xf32, #tpu.memory_space<vmem>>, vector<16x32xf32>
    tpu.vector_store %arg4[%c0_5, %c0_6], %5 {strides = array<i32>} : memref<16x32xf32, #tpu.memory_space<vmem>>, vector<16x32xf32>,
    return
  }
  func.func @transform_0(%arg0: i32) -> (i32, i32) {
    %c0_i32 = arith.constant 0 : i32
    %c0_i32_0 = arith.constant 0 : i32
    return %arg0, %c0_i32 : i32, i32
  }
  func.func @transform_1(%arg0: i32) -> (i32, i32) {
    %c0_i32 = arith.constant 0 : i32
    %c0_i32_0 = arith.constant 0 : i32
    %c0_i32_1 = arith.constant 0 : i32
    return %c0_i32, %c0_i32_0 : i32, i32
  }
  func.func @transform_2(%arg0: i32) -> (i32, i32) {
    %c0_i32 = arith.constant 0 : i32
    %c0_i32_0 = arith.constant 0 : i32
    %c0_i32_1 = arith.constant 0 : i32
    return %c0_i32, %c0_i32_0 : i32, i32
  }
  func.func @transform_3(%arg0: i32) -> (i32, i32) {
    %c0_i32 = arith.constant 0 : i32
    %c0_i32_0 = arith.constant 0 : i32
    return %arg0, %c0_i32 : i32, i32
  }
}

</mosaic_0001>

<llo_original>
// kernel: tpu_custom_call.1
$region0: #{tpu_custom_call.1}
  #allocation0 [shape = 'u32[]', space=smem, size = 0x4, offset = 0x4, fixed_abs, tag = 'smem constant byte address 0x4 - core index']
  #allocation1 [shape = 'u32[144,128]{1,0:T(1,128)}', space=vmem, size = 0x12000, scoped, tag = 'internal scratch']
  %s0 = inlined_call_operand.hbm [shape: f32[16,32], index: 0, kind: input, shape index: {}]
  %s1 = inlined_call_operand.hbm [shape: f32[32,32], index: 1, kind: input, shape index: {}]
  %s2 = inlined_call_operand.vmem [shape: f32[1,32], index: 2, kind: input, shape index: {}]
  %s3 = inlined_call_operand.hbm [shape: f32[16,32], index: 3, kind: output, shape index: {}]
  %s4 = sld [smem:[#allocation0]]
  $region30: #{tpu_custom_call.1} parent=0
    _
  %s6 = ssub.s32 1, %s4
  %s7 = scalar_select 0, %s6, %s4
  $region1: #{tpu_custom_call.1} parent=0
    #allocation2 [shape = 'u8[8192]{0}', space=vmem, size = 0x2000, scoped, tag = 'input window, operand 0, single buffered']
    #allocation3 [shape = 's32[1]{0}', space=sflag, size = 0x4, scoped, tag = 'scoped memory for tpu_custom_call.1']
    #allocation4 [shape = 's32[1]{0}', space=sflag, size = 0x4, scoped, tag = 'scoped memory for tpu_custom_call.1']
    #allocation5 [shape = 'u8[16384]{0}', space=vmem, size = 0x4000, scoped, tag = 'input window, operand 1, single buffered']
    #allocation6 [shape = 's32[1]{0}', space=sflag, size = 0x4, scoped, tag = 'scoped memory for tpu_custom_call.1']
    #allocation7 [shape = 'u8[8192]{0}', space=vmem, size = 0x2000, scoped, tag = 'output window, operand 0, single buffered']
    %8 = vsyncpa [#allocation3], 0
    %9 = vsyncpa [#allocation6], 0
    %10 = vsyncpa [#allocation4], 0
    // Predicated region
    $region2: #{tpu_custom_call.1} parent=1 // pred_check
      _
    $region3: #{tpu_custom_call.1} parent=1 // pred_check_branch
      %12 = sbr.rel (0) target = $region5
    $region4: #{tpu_custom_call.1} parent=1 // pred_region
      %s14 = ssub.s32 256, 256
      %15 = vsyncadd [#allocation3], %s14
      %s16 = sshll.u32 [#allocation2], 4
      %s17 = int_to_ptr.vmem [resolvable:$true] %s16
      %22 = dma.hbm_to_vmem [thread:$0]  %s0, 256, %s17, [#allocation3], 128, 128, 8
    $region5: #{tpu_custom_call.1} parent=1 // pred_fallthru
      _
    // Predicated region
    $region6: #{tpu_custom_call.1} parent=1 // pred_check
      _
    $region7: #{tpu_custom_call.1} parent=1 // pred_check_branch
      %24 = sbr.rel (0) target = $region9
    $region8: #{tpu_custom_call.1} parent=1 // pred_region
      %s26 = ssub.s32 512, 512
      %27 = vsyncadd [#allocation6], %s26
      %s28 = sshll.u32 [#allocation5], 4
      %s29 = int_to_ptr.vmem [resolvable:$true] %s28
      %34 = dma.hbm_to_vmem [thread:$0]  %s1, 512, %s29, [#allocation6], 128, 128, 8
    $region9: #{tpu_custom_call.1} parent=1 // pred_fallthru
      _
    // Predicated region
    $region10: #{tpu_custom_call.1} parent=1 // pred_check
      _
    $region11: #{tpu_custom_call.1} parent=1 // pred_check_branch
      %36 = sbr.rel (0) target = $region13
    $region12: #{tpu_custom_call.1} parent=1 // pred_region
      _
    $region13: #{tpu_custom_call.1} parent=1 // pred_fallthru
      _
    // Predicated region
    $region14: #{tpu_custom_call.1} parent=1 // pred_check
      _
    $region15: #{tpu_custom_call.1} parent=1 // pred_check_branch
      %38 = sbr.rel (0) target = $region17
    $region16: #{tpu_custom_call.1} parent=1 // pred_region
      %39 = dma.done [#allocation3], 256
    $region17: #{tpu_custom_call.1} parent=1 // pred_fallthru
      _
    // Predicated region
    $region18: #{tpu_custom_call.1} parent=1 // pred_check
      _
    $region19: #{tpu_custom_call.1} parent=1 // pred_check_branch
      %41 = sbr.rel (0) target = $region21
    $region20: #{tpu_custom_call.1} parent=1 // pred_region
      %42 = dma.done [#allocation6], 512
    $region21: #{tpu_custom_call.1} parent=1 // pred_fallthru
      _
    %v43 = vld [vmem:[#allocation2] sm:$0xff]
    %v44 = vld [vmem:[#allocation2 + $0x8] sm:$0xff]
    %v45 = vld [vmem:[#allocation5] sm:$0xff]
    %v46 = vld [vmem:[#allocation5 + $0x8] sm:$0xff]
    %v47 = vld [vmem:[#allocation5 + $0x10] sm:$0xff]
    %v48 = vld [vmem:[#allocation5 + $0x18] sm:$0xff]
    %v49 = vld [vmem:[%s2] sm:$0x1]
    %v51 = vlaneseq
    %v52 = vshrl.u32 %v51, 7
    %v53 = vsub.s32 0, %v52
    %v54 = vrot.slane %v49, %v53
    %vm56 = vcmask 261120
    %v58 = vsel %vm56, %v43, 0
    %v61 = vsel %vm56, %v44, 0
    %63 = vmatprep.subr.mxu0 0.0
    %64 = vmatpush1.msra.mxu0 0.0
    %65 = vmatprep.subr.mxu0 0.0
    %66 = vmatpush1.msra.mxu0 0.0
    %67 = vmatprep.subr.mxu0 0.0
    %68 = vmatpush1.msra.mxu0 0.0
    %69 = vmatprep.subr.mxu0 0.0
    %70 = vmatpush1.msra.mxu0 0.0
    %71 = vmatprep.subr.mxu0 0.0
    %72 = vmatpush1.msra.mxu0 0.0
    %73 = vmatprep.subr.mxu0 0.0
    %74 = vmatpush1.msra.mxu0 0.0
    %75 = vmatprep.subr.mxu0 0.0
    %76 = vmatpush1.msra.mxu0 0.0
    %77 = vmatprep.subr.mxu0 0.0
    %78 = vmatpush1.msra.mxu0 0.0
    %79 = vmatprep.subr.mxu0 0.0
    %80 = vmatpush1.msra.mxu0 0.0
    %81 = vmatprep.subr.mxu0 0.0
    %82 = vmatpush1.msra.mxu0 0.0
    %83 = vmatprep.subr.mxu0 0.0
    %84 = vmatpush1.msra.mxu0 0.0
    %85 = vmatprep.subr.mxu0 0.0
    %86 = vmatpush1.msra.mxu0 0.0
    %87 = vmatprep.subr.mxu0 0.0
    %v88 = vand.u32 %v48, 4294901760
    %89 = vmatpush1.msra.mxu0 %v88
    %90 = vmatprep.subr.mxu0 0.0
    %v91 = vand.u32 %v47, 4294901760
    %92 = vmatpush1.msra.mxu0 %v91
    %93 = vmatprep.subr.mxu0 0.0
    %v94 = vand.u32 %v46, 4294901760
    %95 = vmatpush1.msra.mxu0 %v94
    %96 = vmatprep.subr.mxu0 0.0
    %v97 = vand.u32 %v45, 4294901760
    %98 = vmatpush1.msra.mxu0 %v97
    %99 = vmatprep.subr.mxu0 0.0
    %100 = vmatpush2.msra.mxu0 0.0
    %101 = vmatprep.subr.mxu0 0.0
    %102 = vmatpush2.msra.mxu0 0.0
    %103 = vmatprep.subr.mxu0 0.0
    %104 = vmatpush2.msra.mxu0 0.0
    %105 = vmatprep.subr.mxu0 0.0
    %106 = vmatpush2.msra.mxu0 0.0
    %107 = vmatprep.subr.mxu0 0.0
    %108 = vmatpush2.msra.mxu0 0.0
    %109 = vmatprep.subr.mxu0 0.0
    %110 = vmatpush2.msra.mxu0 0.0
    %111 = vmatprep.subr.mxu0 0.0
    %112 = vmatpush2.msra.mxu0 0.0
    %113 = vmatprep.subr.mxu0 0.0
    %114 = vmatpush2.msra.mxu0 0.0
    %115 = vmatprep.subr.mxu0 0.0
    %116 = vmatpush2.msra.mxu0 0.0
    %117 = vmatprep.subr.mxu0 0.0
    %118 = vmatpush2.msra.mxu0 0.0
    %119 = vmatprep.subr.mxu0 0.0
    %120 = vmatpush2.msra.mxu0 0.0
    %121 = vmatprep.subr.mxu0 0.0
    %122 = vmatpush2.msra.mxu0 0.0
    %123 = vmatprep.subr.mxu0 0.0
    %124 = vmatpush2.msra.mxu0 0.0
    %125 = vmatprep.subr.mxu0 0.0
    %126 = vmatpush2.msra.mxu0 0.0
    %127 = vmatprep.subr.mxu0 0.0
    %128 = vmatpush2.msra.mxu0 0.0
    %129 = vmatprep.subr.mxu0 0.0
    %130 = vmatpush2.msra.mxu0 0.0
    %131 = vmatprep.mubr.f32.mxu0 0.0
    %v132 = vand.u32 %v58, 4294901760
    %v133 = vsub.f32 %v58, %v132
    %v134 = vand.u32 %v133, 4294901760
    %v135 = vsub.f32 %v133, %v134
    %v136 = vand.u32 %v135, 4294901760
    %137 = vmatmul.mubr.f32.gmra.mxu0 %v136
    %v138 = vpop.f32.mrf.mxu0
    %v139 = vadd.f32 %v54, %v138
    %v140 = vpop.f32.mrf.mxu0
    %141 = vmatprep.mubr.f32.mxu0 0.0
    %v142 = vand.u32 %v61, 4294901760
    %v143 = vsub.f32 %v61, %v142
    %v144 = vand.u32 %v143, 4294901760
    %v145 = vsub.f32 %v143, %v144
    %v146 = vand.u32 %v145, 4294901760
    %147 = vmatmul.mubr.f32.gmra.mxu0 %v146
    %v148 = vpop.f32.mrf.mxu0
    %v149 = vadd.f32 %v54, %v148
    %v150 = vpop.f32.mrf.mxu0
    %151 = vdwg.mxu0
    %152 = vmatprep.subr.mxu0 0.0
    %153 = vmatpush1.msra.mxu0 0.0
    %154 = vmatprep.subr.mxu0 0.0
    %155 = vmatpush1.msra.mxu0 0.0
    %156 = vmatprep.subr.mxu0 0.0
    %157 = vmatpush1.msra.mxu0 0.0
    %158 = vmatprep.subr.mxu0 0.0
    %159 = vmatpush1.msra.mxu0 0.0
    %160 = vmatprep.subr.mxu0 0.0
    %161 = vmatpush1.msra.mxu0 0.0
    %162 = vmatprep.subr.mxu0 0.0
    %163 = vmatpush1.msra.mxu0 0.0
    %164 = vmatprep.subr.mxu0 0.0
    %165 = vmatpush1.msra.mxu0 0.0
    %166 = vmatprep.subr.mxu0 0.0
    %167 = vmatpush1.msra.mxu0 0.0
    %168 = vmatprep.subr.mxu0 0.0
    %169 = vmatpush1.msra.mxu0 0.0
    %170 = vmatprep.subr.mxu0 0.0
    %171 = vmatpush1.msra.mxu0 0.0
    %172 = vmatprep.subr.mxu0 0.0
    %173 = vmatpush1.msra.mxu0 0.0
    %174 = vmatprep.subr.mxu0 0.0
    %175 = vmatpush1.msra.mxu0 0.0
    %176 = vmatprep.subr.mxu0 0.0
    %v177 = vand.u32 %v48, 4294901760
    %v178 = vsub.f32 %v48, %v177
    %v179 = vand.u32 %v178, 4294901760
    %v180 = vsub.f32 %v178, %v179
    %v181 = vand.u32 %v180, 4294901760
    %182 = vmatpush1.msra.mxu0 %v181
    %183 = vmatprep.subr.mxu0 0.0
    %v184 = vand.u32 %v47, 4294901760
    %v185 = vsub.f32 %v47, %v184
    %v186 = vand.u32 %v185, 4294901760
    %v187 = vsub.f32 %v185, %v186
    %v188 = vand.u32 %v187, 4294901760
    %189 = vmatpush1.msra.mxu0 %v188
    %190 = vmatprep.subr.mxu0 0.0
    %v191 = vand.u32 %v46, 4294901760
    %v192 = vsub.f32 %v46, %v191
    %v193 = vand.u32 %v192, 4294901760
    %v194 = vsub.f32 %v192, %v193
    %v195 = vand.u32 %v194, 4294901760
    %196 = vmatpush1.msra.mxu0 %v195
    %197 = vmatprep.subr.mxu0 0.0
    %v198 = vand.u32 %v45, 4294901760
    %v199 = vsub.f32 %v45, %v198
    %v200 = vand.u32 %v199, 4294901760
    %v201 = vsub.f32 %v199, %v200
    %v202 = vand.u32 %v201, 4294901760
    %203 = vmatpush1.msra.mxu0 %v202
    %204 = vmatprep.subr.mxu0 0.0
    %205 = vmatpush2.msra.mxu0 0.0
    %206 = vmatprep.subr.mxu0 0.0
    %207 = vmatpush2.msra.mxu0 0.0
    %208 = vmatprep.subr.mxu0 0.0
    %209 = vmatpush2.msra.mxu0 0.0
    %210 = vmatprep.subr.mxu0 0.0
    %211 = vmatpush2.msra.mxu0 0.0
    %212 = vmatprep.subr.mxu0 0.0
    %213 = vmatpush2.msra.mxu0 0.0
    %214 = vmatprep.subr.mxu0 0.0
    %215 = vmatpush2.msra.mxu0 0.0
    %216 = vmatprep.subr.mxu0 0.0
    %217 = vmatpush2.msra.mxu0 0.0
    %218 = vmatprep.subr.mxu0 0.0
    %219 = vmatpush2.msra.mxu0 0.0
    %220 = vmatprep.subr.mxu0 0.0
    %221 = vmatpush2.msra.mxu0 0.0
    %222 = vmatprep.subr.mxu0 0.0
    %223 = vmatpush2.msra.mxu0 0.0
    %224 = vmatprep.subr.mxu0 0.0
    %225 = vmatpush2.msra.mxu0 0.0
    %226 = vmatprep.subr.mxu0 0.0
    %227 = vmatpush2.msra.mxu0 0.0
    %228 = vmatprep.subr.mxu0 0.0
    %229 = vmatpush2.msra.mxu0 0.0
    %230 = vmatprep.subr.mxu0 0.0
    %231 = vmatpush2.msra.mxu0 0.0
    %232 = vmatprep.subr.mxu0 0.0
    %233 = vmatpush2.msra.mxu0 0.0
    %234 = vmatprep.subr.mxu0 0.0
    %235 = vmatpush2.msra.mxu0 0.0
    %236 = vmatprep.mubr.f32.mxu0 0.0
    %v237 = vand.u32 %v58, 4294901760
    %238 = vmatmul.mubr.f32.gmra.mxu0 %v237
    %v239 = vpop.f32.mrf.mxu0
    %v240 = vadd.f32 %v139, %v239
    %v241 = vpop.f32.mrf.mxu0
    %242 = vmatprep.mubr.f32.mxu0 0.0
    %v243 = vand.u32 %v61, 4294901760
    %244 = vmatmul.mubr.f32.gmra.mxu0 %v243
    %v245 = vpop.f32.mrf.mxu0
    %v246 = vadd.f32 %v149, %v245
    %v247 = vpop.f32.mrf.mxu0
    %248 = vdwg.mxu0
    %249 = vmatprep.subr.mxu0 0.0
    %250 = vmatpush1.msra.mxu0 0.0
    %251 = vmatprep.subr.mxu0 0.0
    %252 = vmatpush1.msra.mxu0 0.0
    %253 = vmatprep.subr.mxu0 0.0
    %254 = vmatpush1.msra.mxu0 0.0
    %255 = vmatprep.subr.mxu0 0.0
    %256 = vmatpush1.msra.mxu0 0.0
    %257 = vmatprep.subr.mxu0 0.0
    %258 = vmatpush1.msra.mxu0 0.0
    %259 = vmatprep.subr.mxu0 0.0
    %260 = vmatpush1.msra.mxu0 0.0
    %261 = vmatprep.subr.mxu0 0.0
    %262 = vmatpush1.msra.mxu0 0.0
    %263 = vmatprep.subr.mxu0 0.0
    %264 = vmatpush1.msra.mxu0 0.0
    %265 = vmatprep.subr.mxu0 0.0
    %266 = vmatpush1.msra.mxu0 0.0
    %267 = vmatprep.subr.mxu0 0.0
    %268 = vmatpush1.msra.mxu0 0.0
    %269 = vmatprep.subr.mxu0 0.0
    %270 = vmatpush1.msra.mxu0 0.0
    %271 = vmatprep.subr.mxu0 0.0
    %272 = vmatpush1.msra.mxu0 0.0
    %273 = vmatprep.subr.mxu0 0.0
    %v274 = vand.u32 %v48, 4294901760
    %v275 = vsub.f32 %v48, %v274
    %276 = vmatpush1.msra.mxu0 %v275
    %277 = vmatprep.subr.mxu0 0.0
    %v278 = vand.u32 %v47, 4294901760
    %v279 = vsub.f32 %v47, %v278
    %280 = vmatpush1.msra.mxu0 %v279
    %281 = vmatprep.subr.mxu0 0.0
    %v282 = vand.u32 %v46, 4294901760
    %v283 = vsub.f32 %v46, %v282
    %284 = vmatpush1.msra.mxu0 %v283
    %285 = vmatprep.subr.mxu0 0.0
    %v286 = vand.u32 %v45, 4294901760
    %v287 = vsub.f32 %v45, %v286
    %288 = vmatpush1.msra.mxu0 %v287
    %289 = vmatprep.subr.mxu0 0.0
    %290 = vmatpush2.msra.mxu0 0.0
    %291 = vmatprep.subr.mxu0 0.0
    %292 = vmatpush2.msra.mxu0 0.0
    %293 = vmatprep.subr.mxu0 0.0
    %294 = vmatpush2.msra.mxu0 0.0
    %295 = vmatprep.subr.mxu0 0.0
    %296 = vmatpush2.msra.mxu0 0.0
    %297 = vmatprep.subr.mxu0 0.0
    %298 = vmatpush2.msra.mxu0 0.0
    %299 = vmatprep.subr.mxu0 0.0
    %300 = vmatpush2.msra.mxu0 0.0
    %301 = vmatprep.subr.mxu0 0.0
    %302 = vmatpush2.msra.mxu0 0.0
    %303 = vmatprep.subr.mxu0 0.0
    %304 = vmatpush2.msra.mxu0 0.0
    %305 = vmatprep.subr.mxu0 0.0
    %306 = vmatpush2.msra.mxu0 0.0
    %307 = vmatprep.subr.mxu0 0.0
    %308 = vmatpush2.msra.mxu0 0.0
    %309 = vmatprep.subr.mxu0 0.0
    %310 = vmatpush2.msra.mxu0 0.0
    %311 = vmatprep.subr.mxu0 0.0
    %312 = vmatpush2.msra.mxu0 0.0
    %313 = vmatprep.subr.mxu0 0.0
    %314 = vmatpush2.msra.mxu0 0.0
    %315 = vmatprep.subr.mxu0 0.0
    %316 = vmatpush2.msra.mxu0 0.0
    %317 = vmatprep.subr.mxu0 0.0
    %318 = vmatpush2.msra.mxu0 0.0
    %319 = vmatprep.subr.mxu0 0.0
    %320 = vmatpush2.msra.mxu0 0.0
    %321 = vmatprep.mubr.f32.mxu0 0.0
    %v322 = vand.u32 %v58, 4294901760
    %v323 = vsub.f32 %v58, %v322
    %324 = vmatmul.mubr.f32.gmra.mxu0 %v323
    %v325 = vpop.f32.mrf.mxu0
    %v326 = vadd.f32 %v240, %v325
    %v327 = vpop.f32.mrf.mxu0
    %328 = vmatprep.mubr.f32.mxu0 0.0
    %v329 = vand.u32 %v61, 4294901760
    %v330 = vsub.f32 %v61, %v329
    %331 = vmatmul.mubr.f32.gmra.mxu0 %v330
    %v332 = vpop.f32.mrf.mxu0
    %v333 = vadd.f32 %v246, %v332
    %v334 = vpop.f32.mrf.mxu0
    %335 = vdwg.mxu0
    %336 = vmatprep.subr.mxu0 0.0
    %337 = vmatpush1.msra.mxu0 0.0
    %338 = vmatprep.subr.mxu0 0.0
    %339 = vmatpush1.msra.mxu0 0.0
    %340 = vmatprep.subr.mxu0 0.0
    %341 = vmatpush1.msra.mxu0 0.0
    %342 = vmatprep.subr.mxu0 0.0
    %343 = vmatpush1.msra.mxu0 0.0
    %344 = vmatprep.subr.mxu0 0.0
    %345 = vmatpush1.msra.mxu0 0.0
    %346 = vmatprep.subr.mxu0 0.0
    %347 = vmatpush1.msra.mxu0 0.0
    %348 = vmatprep.subr.mxu0 0.0
    %349 = vmatpush1.msra.mxu0 0.0
    %350 = vmatprep.subr.mxu0 0.0
    %351 = vmatpush1.msra.mxu0 0.0
    %352 = vmatprep.subr.mxu0 0.0
    %353 = vmatpush1.msra.mxu0 0.0
    %354 = vmatprep.subr.mxu0 0.0
    %355 = vmatpush1.msra.mxu0 0.0
    %356 = vmatprep.subr.mxu0 0.0
    %357 = vmatpush1.msra.mxu0 0.0
    %358 = vmatprep.subr.mxu0 0.0
    %359 = vmatpush1.msra.mxu0 0.0
    %360 = vmatprep.subr.mxu0 0.0
    %v361 = vand.u32 %v48, 4294901760
    %362 = vmatpush1.msra.mxu0 %v361
    %363 = vmatprep.subr.mxu0 0.0
    %v364 = vand.u32 %v47, 4294901760
    %365 = vmatpush1.msra.mxu0 %v364
    %366 = vmatprep.subr.mxu0 0.0
    %v367 = vand.u32 %v46, 4294901760
    %368 = vmatpush1.msra.mxu0 %v367
    %369 = vmatprep.subr.mxu0 0.0
    %v370 = vand.u32 %v45, 4294901760
    %371 = vmatpush1.msra.mxu0 %v370
    %372 = vmatprep.subr.mxu0 0.0
    %373 = vmatpush2.msra.mxu0 0.0
    %374 = vmatprep.subr.mxu0 0.0
    %375 = vmatpush2.msra.mxu0 0.0
    %376 = vmatprep.subr.mxu0 0.0
    %377 = vmatpush2.msra.mxu0 0.0
    %378 = vmatprep.subr.mxu0 0.0
    %379 = vmatpush2.msra.mxu0 0.0
    %380 = vmatprep.subr.mxu0 0.0
    %381 = vmatpush2.msra.mxu0 0.0
    %382 = vmatprep.subr.mxu0 0.0
    %383 = vmatpush2.msra.mxu0 0.0
    %384 = vmatprep.subr.mxu0 0.0
    %385 = vmatpush2.msra.mxu0 0.0
    %386 = vmatprep.subr.mxu0 0.0
    %387 = vmatpush2.msra.mxu0 0.0
    %388 = vmatprep.subr.mxu0 0.0
    %389 = vmatpush2.msra.mxu0 0.0
    %390 = vmatprep.subr.mxu0 0.0
    %391 = vmatpush2.msra.mxu0 0.0
    %392 = vmatprep.subr.mxu0 0.0
    %393 = vmatpush2.msra.mxu0 0.0
    %394 = vmatprep.subr.mxu0 0.0
    %395 = vmatpush2.msra.mxu0 0.0
    %396 = vmatprep.subr.mxu0 0.0
    %397 = vmatpush2.msra.mxu0 0.0
    %398 = vmatprep.subr.mxu0 0.0
    %399 = vmatpush2.msra.mxu0 0.0
    %400 = vmatprep.subr.mxu0 0.0
    %401 = vmatpush2.msra.mxu0 0.0
    %402 = vmatprep.subr.mxu0 0.0
    %403 = vmatpush2.msra.mxu0 0.0
    %404 = vmatprep.mubr.f32.mxu0 0.0
    %v405 = vand.u32 %v58, 4294901760
    %v406 = vsub.f32 %v58, %v405
    %v407 = vand.u32 %v406, 4294901760
    %408 = vmatmul.mubr.f32.gmra.mxu0 %v407
    %v409 = vpop.f32.mrf.mxu0
    %v410 = vadd.f32 %v326, %v409
    %v411 = vpop.f32.mrf.mxu0
    %412 = vmatprep.mubr.f32.mxu0 0.0
    %v413 = vand.u32 %v61, 4294901760
    %v414 = vsub.f32 %v61, %v413
    %v415 = vand.u32 %v414, 4294901760
    %416 = vmatmul.mubr.f32.gmra.mxu0 %v415
    %v417 = vpop.f32.mrf.mxu0
    %v418 = vadd.f32 %v333, %v417
    %v419 = vpop.f32.mrf.mxu0
    %420 = vdwg.mxu0
    %421 = vmatprep.subr.mxu0 0.0
    %422 = vmatpush1.msra.mxu0 0.0
    %423 = vmatprep.subr.mxu0 0.0
    %424 = vmatpush1.msra.mxu0 0.0
    %425 = vmatprep.subr.mxu0 0.0
    %426 = vmatpush1.msra.mxu0 0.0
    %427 = vmatprep.subr.mxu0 0.0
    %428 = vmatpush1.msra.mxu0 0.0
    %429 = vmatprep.subr.mxu0 0.0
    %430 = vmatpush1.msra.mxu0 0.0
    %431 = vmatprep.subr.mxu0 0.0
    %432 = vmatpush1.msra.mxu0 0.0
    %433 = vmatprep.subr.mxu0 0.0
    %434 = vmatpush1.msra.mxu0 0.0
    %435 = vmatprep.subr.mxu0 0.0
    %436 = vmatpush1.msra.mxu0 0.0
    %437 = vmatprep.subr.mxu0 0.0
    %438 = vmatpush1.msra.mxu0 0.0
    %439 = vmatprep.subr.mxu0 0.0
    %440 = vmatpush1.msra.mxu0 0.0
    %441 = vmatprep.subr.mxu0 0.0
    %442 = vmatpush1.msra.mxu0 0.0
    %443 = vmatprep.subr.mxu0 0.0
    %444 = vmatpush1.msra.mxu0 0.0
    %445 = vmatprep.subr.mxu0 0.0
    %v446 = vand.u32 %v48, 4294901760
    %v447 = vsub.f32 %v48, %v446
    %v448 = vand.u32 %v447, 4294901760
    %449 = vmatpush1.msra.mxu0 %v448
    %450 = vmatprep.subr.mxu0 0.0
    %v451 = vand.u32 %v47, 4294901760
    %v452 = vsub.f32 %v47, %v451
    %v453 = vand.u32 %v452, 4294901760
    %454 = vmatpush1.msra.mxu0 %v453
    %455 = vmatprep.subr.mxu0 0.0
    %v456 = vand.u32 %v46, 4294901760
    %v457 = vsub.f32 %v46, %v456
    %v458 = vand.u32 %v457, 4294901760
    %459 = vmatpush1.msra.mxu0 %v458
    %460 = vmatprep.subr.mxu0 0.0
    %v461 = vand.u32 %v45, 4294901760
    %v462 = vsub.f32 %v45, %v461
    %v463 = vand.u32 %v462, 4294901760
    %464 = vmatpush1.msra.mxu0 %v463
    %465 = vmatprep.subr.mxu0 0.0
    %466 = vmatpush2.msra.mxu0 0.0
    %467 = vmatprep.subr.mxu0 0.0
    %468 = vmatpush2.msra.mxu0 0.0
    %469 = vmatprep.subr.mxu0 0.0
    %470 = vmatpush2.msra.mxu0 0.0
    %471 = vmatprep.subr.mxu0 0.0
    %472 = vmatpush2.msra.mxu0 0.0
    %473 = vmatprep.subr.mxu0 0.0
    %474 = vmatpush2.msra.mxu0 0.0
    %475 = vmatprep.subr.mxu0 0.0
    %476 = vmatpush2.msra.mxu0 0.0
    %477 = vmatprep.subr.mxu0 0.0
    %478 = vmatpush2.msra.mxu0 0.0
    %479 = vmatprep.subr.mxu0 0.0
    %480 = vmatpush2.msra.mxu0 0.0
    %481 = vmatprep.subr.mxu0 0.0
    %482 = vmatpush2.msra.mxu0 0.0
    %483 = vmatprep.subr.mxu0 0.0
    %484 = vmatpush2.msra.mxu0 0.0
    %485 = vmatprep.subr.mxu0 0.0
    %486 = vmatpush2.msra.mxu0 0.0
    %487 = vmatprep.subr.mxu0 0.0
    %488 = vmatpush2.msra.mxu0 0.0
    %489 = vmatprep.subr.mxu0 0.0
    %490 = vmatpush2.msra.mxu0 0.0
    %491 = vmatprep.subr.mxu0 0.0
    %492 = vmatpush2.msra.mxu0 0.0
    %493 = vmatprep.subr.mxu0 0.0
    %494 = vmatpush2.msra.mxu0 0.0
    %495 = vmatprep.subr.mxu0 0.0
    %496 = vmatpush2.msra.mxu0 0.0
    %497 = vmatprep.mubr.f32.mxu0 0.0
    %v498 = vand.u32 %v58, 4294901760
    %499 = vmatmul.mubr.f32.gmra.mxu0 %v498
    %v500 = vpop.f32.mrf.mxu0
    %v501 = vadd.f32 %v410, %v500
    %v502 = vpop.f32.mrf.mxu0
    %503 = vmatprep.mubr.f32.mxu0 0.0
    %v504 = vand.u32 %v61, 4294901760
    %505 = vmatmul.mubr.f32.gmra.mxu0 %v504
    %v506 = vpop.f32.mrf.mxu0
    %v507 = vadd.f32 %v418, %v506
    %v508 = vpop.f32.mrf.mxu0
    %509 = vdwg.mxu0
    %510 = vmatprep.subr.mxu0 0.0
    %511 = vmatpush1.msra.mxu0 0.0
    %512 = vmatprep.subr.mxu0 0.0
    %513 = vmatpush1.msra.mxu0 0.0
    %514 = vmatprep.subr.mxu0 0.0
    %515 = vmatpush1.msra.mxu0 0.0
    %516 = vmatprep.subr.mxu0 0.0
    %517 = vmatpush1.msra.mxu0 0.0
    %518 = vmatprep.subr.mxu0 0.0
    %519 = vmatpush1.msra.mxu0 0.0
    %520 = vmatprep.subr.mxu0 0.0
    %521 = vmatpush1.msra.mxu0 0.0
    %522 = vmatprep.subr.mxu0 0.0
    %523 = vmatpush1.msra.mxu0 0.0
    %524 = vmatprep.subr.mxu0 0.0
    %525 = vmatpush1.msra.mxu0 0.0
    %526 = vmatprep.subr.mxu0 0.0
    %527 = vmatpush1.msra.mxu0 0.0
    %528 = vmatprep.subr.mxu0 0.0
    %529 = vmatpush1.msra.mxu0 0.0
    %530 = vmatprep.subr.mxu0 0.0
    %531 = vmatpush1.msra.mxu0 0.0
    %532 = vmatprep.subr.mxu0 0.0
    %533 = vmatpush1.msra.mxu0 0.0
    %534 = vmatprep.subr.mxu0 0.0
    %v535 = vand.u32 %v48, 4294901760
    %536 = vmatpush1.msra.mxu0 %v535
    %537 = vmatprep.subr.mxu0 0.0
    %v538 = vand.u32 %v47, 4294901760
    %539 = vmatpush1.msra.mxu0 %v538
    %540 = vmatprep.subr.mxu0 0.0
    %v541 = vand.u32 %v46, 4294901760
    %542 = vmatpush1.msra.mxu0 %v541
    %543 = vmatprep.subr.mxu0 0.0
    %v544 = vand.u32 %v45, 4294901760
    %545 = vmatpush1.msra.mxu0 %v544
    %546 = vmatprep.subr.mxu0 0.0
    %547 = vmatpush2.msra.mxu0 0.0
    %548 = vmatprep.subr.mxu0 0.0
    %549 = vmatpush2.msra.mxu0 0.0
    %550 = vmatprep.subr.mxu0 0.0
    %551 = vmatpush2.msra.mxu0 0.0
    %552 = vmatprep.subr.mxu0 0.0
    %553 = vmatpush2.msra.mxu0 0.0
    %554 = vmatprep.subr.mxu0 0.0
    %555 = vmatpush2.msra.mxu0 0.0
    %556 = vmatprep.subr.mxu0 0.0
    %557 = vmatpush2.msra.mxu0 0.0
    %558 = vmatprep.subr.mxu0 0.0
    %559 = vmatpush2.msra.mxu0 0.0
    %560 = vmatprep.subr.mxu0 0.0
    %561 = vmatpush2.msra.mxu0 0.0
    %562 = vmatprep.subr.mxu0 0.0
    %563 = vmatpush2.msra.mxu0 0.0
    %564 = vmatprep.subr.mxu0 0.0
    %565 = vmatpush2.msra.mxu0 0.0
    %566 = vmatprep.subr.mxu0 0.0
    %567 = vmatpush2.msra.mxu0 0.0
    %568 = vmatprep.subr.mxu0 0.0
    %569 = vmatpush2.msra.mxu0 0.0
    %570 = vmatprep.subr.mxu0 0.0
    %571 = vmatpush2.msra.mxu0 0.0
    %572 = vmatprep.subr.mxu0 0.0
    %573 = vmatpush2.msra.mxu0 0.0
    %574 = vmatprep.subr.mxu0 0.0
    %575 = vmatpush2.msra.mxu0 0.0
    %576 = vmatprep.subr.mxu0 0.0
    %577 = vmatpush2.msra.mxu0 0.0
    %578 = vmatprep.mubr.f32.mxu0 0.0
    %v579 = vand.u32 %v58, 4294901760
    %580 = vmatmul.mubr.f32.gmra.mxu0 %v579
    %v581 = vpop.f32.mrf.mxu0
    %v582 = vadd.f32 %v501, %v581
    %v583 = vpop.f32.mrf.mxu0
    %584 = vmatprep.mubr.f32.mxu0 0.0
    %v585 = vand.u32 %v61, 4294901760
    %586 = vmatmul.mubr.f32.gmra.mxu0 %v585
    %v587 = vpop.f32.mrf.mxu0
    %v588 = vadd.f32 %v507, %v587
    %v589 = vpop.f32.mrf.mxu0
    %590 = vdwg.mxu0
    %591 = vst.msk [vmem:[#allocation7] sm:$0xff] %vm56, %v582
    %592 = vst.msk [vmem:[#allocation7 + $0x8] sm:$0xff] %vm56, %v588
    // Predicated region
    $region22: #{tpu_custom_call.1} parent=1 // pred_check
      _
    $region23: #{tpu_custom_call.1} parent=1 // pred_check_branch
      %594 = sbr.rel (0) target = $region25
    $region24: #{tpu_custom_call.1} parent=1 // pred_region
      %s596 = ssub.s32 256, 256
      %597 = vsyncadd [#allocation4], %s596
      %s598 = sshll.u32 [#allocation7], 4
      %s599 = int_to_ptr.vmem [resolvable:$true] %s598
      %604 = dma.vmem_to_hbm [thread:$0]  %s599, 256, %s3, [#allocation4], 128, 128, 8
    $region25: #{tpu_custom_call.1} parent=1 // pred_fallthru
      _
    // Predicated region
    $region26: #{tpu_custom_call.1} parent=1 // pred_check
      _
    $region27: #{tpu_custom_call.1} parent=1 // pred_check_branch
      %606 = sbr.rel (0) target = $region29
    $region28: #{tpu_custom_call.1} parent=1 // pred_region
      %607 = dma.done [#allocation4], 256
    $region29: #{tpu_custom_call.1} parent=1 // pred_fallthru
      _
    %608 = vsyncpa [#allocation3], 1
    %609 = vsyncpa [#allocation6], 1
    %610 = vsyncpa [#allocation4], 1

</llo_original>
